<compile_context>
chip_gen: v7x
topology: tpu7x:2x2x1
jax: 0.10.0
libtpu: 0.0.40
codegen_flags: <defaults>
</compile_context>

<pallas_src>
import functools

import jax
import jax.numpy as jnp
from jax.experimental import pallas as pl
from jax.experimental.pallas import tpu as pltpu


def _ls_ce_kernel(x_ref, tgt_ref, out_ref, *, smoothing: float,
                  n_total: int, tile_n: int):
    i = pl.program_id(0)
    confidence = 1.0 - smoothing

    x = x_ref[...].astype(jnp.float32)   # (TILE_N, C) cast in-kernel (native-dtype DMA)
    tgt = tgt_ref[...]                   # (TILE_N, 1) int32
    logp = jnp.log(x)                    # (TILE_N, C)

    tn, c = x.shape
    cls_idx = jax.lax.broadcasted_iota(jnp.int32, (tn, c), 1)
    eq = cls_idx == tgt                  # one-hot mask of the target class

    # Fused weighted sum:  -sum(w * logp) with
    #   w = confidence + smoothing/C   on the target class
    #   w =              smoothing/C   elsewhere
    # == confidence * nll + smoothing * smooth   (single XLU reduction).
    w_hi = confidence + smoothing / c
    w_lo = smoothing / c
    weighted = logp * jnp.where(eq, w_hi, w_lo)            # one vmul/elem
    row_loss = -jnp.sum(weighted, axis=-1, keepdims=True)  # (TILE_N, 1)

    # Mask rows past the true batch size (partial last tile).
    row_idx = i * tile_n + jax.lax.broadcasted_iota(jnp.int32, (tn, 1), 0)
    row_loss = jnp.where(row_idx < n_total, row_loss, 0.0)

    tile_sum = jnp.sum(row_loss)                            # f32 scalar

    # Lane-dense (1, 8, 128) partial-sum block: tile_sum at [0,0,0], zeros
    # elsewhere; summed (and divided by N) outside the kernel.
    sub = jax.lax.broadcasted_iota(jnp.int32, (1, 8, 128), 1)
    lane = jax.lax.broadcasted_iota(jnp.int32, (1, 8, 128), 2)
    out_ref[...] = jnp.where((sub == 0) & (lane == 0), tile_sum, 0.0)


def label_smoothing_cross_entropy(x, target, smoothing: float = 0.1,
                                  max_rows_per_tile: int | None = None):
    """x: (N, C) probabilities (f32/bf16); target: (N,) int class ids."""
    n, c = x.shape
    tgt2d = target.astype(jnp.int32).reshape(n, 1)

    # Per-generation VMEM budget (f32 working-set bytes for one x block).
    try:
        vmem_cap = pltpu.get_tpu_info().vmem_capacity_bytes
    except Exception:
        vmem_cap = 64 << 20                      # conservative (v7x-sized)
    if vmem_cap >= (128 << 20):                  # v5e / v6e: 128 MiB VMEM
        budget_bytes, vmem_limit = 8 << 20, 64 << 20
    else:                                        # v7x: 64 MiB VMEM
        budget_bytes, vmem_limit = 4 << 20, 32 << 20

    itemsize = jnp.dtype(x.dtype).itemsize
    row_align = {1: 32, 2: 16}.get(itemsize, 8)  # native sublane pack per dtype

    # Budget against lane-padded f32 bytes: x row pads C up to a multiple of
    # 128 lanes; the (tile_n, 1) int32 target column pads to 128 lanes too.
    padded_c = ((c + 127) // 128) * 128
    per_row_f32_bytes = (padded_c + 128) * 4
    tile_n = max(row_align, budget_bytes // per_row_f32_bytes)
    if max_rows_per_tile is not None:
        tile_n = min(tile_n, max_rows_per_tile)
    tile_n = max(row_align, (tile_n // row_align) * row_align)
    if n <= tile_n:
        tile_n = n                               # single full-array block (any N)
    grid = pl.cdiv(n, tile_n)

    kernel = functools.partial(
        _ls_ce_kernel, smoothing=float(smoothing), n_total=n, tile_n=tile_n)

    partials = pl.pallas_call(
        kernel,
        out_shape=jax.ShapeDtypeStruct((grid, 8, 128), jnp.float32),
        grid=(grid,),
        in_specs=[
            pl.BlockSpec((tile_n, c), lambda i: (i, 0)),     # x tile (native dtype)
            pl.BlockSpec((tile_n, 1), lambda i: (i, 0)),     # target tile
        ],
        out_specs=pl.BlockSpec((1, 8, 128), lambda i: (i, 0, 0)),  # per-tile partial
        compiler_params=pltpu.CompilerParams(
            dimension_semantics=("parallel",),   # tiles are independent -> both TCs on v7x
            vmem_limit_bytes=vmem_limit,
        ),
        cost_estimate=pl.CostEstimate(
            flops=int(4 * n * c),
            transcendentals=int(n * c),          # log per element (EUP)
            bytes_accessed=int(n * c * itemsize + n * 4 + grid * 8 * 128 * 4),
        ),
    )(x, tgt2d)

    # Final reduction of the per-tile partial sums (zeros everywhere except
    # the [i, 0, 0] slots), then the batch mean.
    return jnp.sum(partials) * (1.0 / n)


def _reference(x, target, smoothing=0.1):
    confidence = 1.0 - smoothing
    logp = jnp.log(x.astype(jnp.float32))
    nll = -jnp.take_along_axis(logp, target[:, None], axis=-1)[:, 0]
    smooth = -jnp.mean(logp, axis=-1)
    return jnp.mean(confidence * nll + smoothing * smooth)


if __name__ == "__main__":
    key = jax.random.PRNGKey(0)
    kx, kt = jax.random.split(key)

    # Small shapes consistent with the module: batch=8, classes=32.
    N, C = 8, 32
    logits = jax.random.normal(kx, (N, C), dtype=jnp.float32)
    x = jax.nn.softmax(logits, axis=-1)                    # module expects probabilities
    target = jax.random.randint(kt, (N,), 0, C, dtype=jnp.int32)

    loss = label_smoothing_cross_entropy(x, target, smoothing=0.1)
    loss = jax.block_until_ready(loss)
    ref = _reference(x, target, smoothing=0.1)
    assert jnp.allclose(loss, ref, rtol=1e-5, atol=1e-6), (loss, ref)

    # Second check: grid > 1, "parallel" per-tile partial outputs, and
    # partial-last-tile masking (N not a multiple of the row tile).
    N2, C2 = 20, 32
    kx2, kt2 = jax.random.split(jax.random.PRNGKey(1))
    x2 = jax.nn.softmax(jax.random.normal(kx2, (N2, C2), jnp.float32), axis=-1)
    t2 = jax.random.randint(kt2, (N2,), 0, C2, dtype=jnp.int32)
    loss2 = label_smoothing_cross_entropy(x2, t2, smoothing=0.1, max_rows_per_tile=8)
    loss2 = jax.block_until_ready(loss2)
    ref2 = _reference(x2, t2, smoothing=0.1)
    assert jnp.allclose(loss2, ref2, rtol=1e-5, atol=1e-5), (loss2, ref2)

    print("KERNEL_OK")
</pallas_src>

<mosaic_0001>
module attributes {stable_mosaic.version = 11 : i64} {
  func.func @_ls_ce_kernel(%arg0: i32, %arg1: memref<8x32xf32, #tpu.memory_space<vmem>>, %arg2: memref<8x1xi32, #tpu.memory_space<vmem>>, %arg3: memref<1x8x128xf32, #tpu.memory_space<vmem>>) attributes {dimension_semantics = [#tpu.dimension_semantics<parallel>], iteration_bounds = array<i64: 1>, scalar_prefetch = 0 : i64, scratch_operands = 0 : i64, tpu.core_type = #tpu.core_type<tc>, window_params = [{transform_indices = @transform_0, window_bounds = array<i64: 8, 32>}, {transform_indices = @transform_1, window_bounds = array<i64: 8, 1>}, {transform_indices = @transform_2, window_bounds = array<i64: 1, 8, 128>}]} {
    %c0 = arith.constant 0 : index
    %c0_0 = arith.constant 0 : index
    %0 = vector.load %arg1[%c0, %c0_0] : memref<8x32xf32, #tpu.memory_space<vmem>>, vector<8x32xf32>
    %c0_1 = arith.constant 0 : index
    %c0_2 = arith.constant 0 : index
    %1 = vector.load %arg2[%c0_1, %c0_2] : memref<8x1xi32, #tpu.memory_space<vmem>>, vector<8x1xi32>
    %2 = math.log %0 : vector<8x32xf32>
    %3 = tpu.iota {dimensions = array<i32: 1>} : vector<8x32xi32>
    %4 = vector.broadcast %1 : vector<8x1xi32> to vector<8x32xi32>
    %5 = arith.cmpi eq, %3, %4 : vector<8x32xi32>
    %cst = arith.constant 0.903124988 : f32
    %cst_3 = arith.constant 3.125000e-03 : f32
    %6 = vector.broadcast %cst : f32 to vector<8x32xf32>
    %7 = vector.broadcast %cst_3 : f32 to vector<8x32xf32>
    %8 = arith.select %5, %6, %7 : vector<8x32xi1>, vector<8x32xf32>
    %9 = arith.mulf %2, %8 : vector<8x32xf32>
    %cst_4 = arith.constant dense<0.000000e+00> : vector<8xf32>
    %10 = vector.multi_reduction <add>, %9, %cst_4 [1] : vector<8x32xf32> to vector<8xf32>
    %11 = vector.shape_cast %10 : vector<8xf32> to vector<8x1xf32>
    %cst_5 = arith.constant 0.000000e+00 : f32
    %12 = vector.broadcast %cst_5 : f32 to vector<8x1xf32>
    %13 = arith.subf %12, %11 : vector<8x1xf32>
    %c8_i32 = arith.constant 8 : i32
    %14 = arith.muli %arg0, %c8_i32 : i32
    %15 = tpu.iota {dimensions = array<i32: 0>} : vector<8x1xi32>
    %16 = vector.broadcast %14 : i32 to vector<8x1xi32>
    %17 = arith.addi %16, %15 : vector<8x1xi32>
    %c8_i32_6 = arith.constant 8 : i32
    %18 = vector.broadcast %c8_i32_6 : i32 to vector<8x1xi32>
    %19 = arith.cmpi slt, %17, %18 : vector<8x1xi32>
    %cst_7 = arith.constant 0.000000e+00 : f32
    %20 = vector.broadcast %cst_7 : f32 to vector<8x1xf32>
    %21 = arith.select %19, %13, %20 : vector<8x1xi1>, vector<8x1xf32>
    %22 = vector.shape_cast %21 : vector<8x1xf32> to vector<1x8x1xf32>
    %cst_8 = arith.constant dense<0.000000e+00> : vector<1xf32>
    %23 = vector.multi_reduction <add>, %22, %cst_8 [1, 2] : vector<1x8x1xf32> to vector<1xf32>
    %24 = vector.shape_cast %23 : vector<1xf32> to vector<1x1x1xf32>
    %25 = vector.extract %24[0, 0, 0] : f32 from vector<1x1x1xf32>
    %26 = tpu.iota {dimensions = array<i32: 1>} : vector<1x8x128xi32>
    %27 = tpu.iota {dimensions = array<i32: 2>} : vector<1x8x128xi32>
    %c0_i32 = arith.constant 0 : i32
    %28 = vector.broadcast %c0_i32 : i32 to vector<1x8x128xi32>
    %29 = arith.cmpi eq, %26, %28 : vector<1x8x128xi32>
    %c0_i32_9 = arith.constant 0 : i32
    %30 = vector.broadcast %c0_i32_9 : i32 to vector<1x8x128xi32>
    %31 = arith.cmpi eq, %27, %30 : vector<1x8x128xi32>
    %32 = arith.andi %29, %31 : vector<1x8x128xi1>
    %cst_10 = arith.constant 0.000000e+00 : f32
    %33 = vector.broadcast %25 : f32 to vector<1x8x128xf32>
    %34 = vector.broadcast %cst_10 : f32 to vector<1x8x128xf32>
    %35 = arith.select %32, %33, %34 : vector<1x8x128xi1>, vector<1x8x128xf32>
    %c0_11 = arith.constant 0 : index
    %c0_12 = arith.constant 0 : index
    %c0_13 = arith.constant 0 : index
    %36 = vector.load %arg3[%c0_11, %c0_12, %c0_13] : memref<1x8x128xf32, #tpu.memory_space<vmem>>, vector<1x8x128xf32>
    tpu.vector_store %arg3[%c0_11, %c0_12, %c0_13], %35 {strides = array<i32>} : memref<1x8x128xf32, #tpu.memory_space<vmem>>, vector<1x8x128xf32>,
    return
  }
  func.func @transform_0(%arg0: i32) -> (i32, i32) {
    %c0_i32 = arith.constant 0 : i32
    %c0_i32_0 = arith.constant 0 : i32
    return %arg0, %c0_i32 : i32, i32
  }
  func.func @transform_1(%arg0: i32) -> (i32, i32) {
    %c0_i32 = arith.constant 0 : i32
    %c0_i32_0 = arith.constant 0 : i32
    return %arg0, %c0_i32 : i32, i32
  }
  func.func @transform_2(%arg0: i32) -> (i32, i32, i32) {
    %c0_i32 = arith.constant 0 : i32
    %c0_i32_0 = arith.constant 0 : i32
    %c0_i32_1 = arith.constant 0 : i32
    return %arg0, %c0_i32, %c0_i32_0 : i32, i32, i32
  }
}

</mosaic_0001>

<llo_original>
// kernel: tpu_custom_call.1
$region0: #{tpu_custom_call.1}
  #allocation0 [shape = 'u32[]', space=smem, size = 0x4, offset = 0x4, fixed_abs, tag = 'smem constant byte address 0x4 - core index']
  #allocation1 [shape = 'u32[144,128]{1,0:T(1,128)}', space=vmem, size = 0x12000, scoped, tag = 'internal scratch']
  %s0 = inlined_call_operand.vmem [shape: f32[8,32], index: 0, kind: input, shape index: {}]
  %s1 = inlined_call_operand.vmem [shape: s32[8,1], index: 1, kind: input, shape index: {}]
  %s2 = inlined_call_operand.hbm [shape: f32[1,8,128], index: 2, kind: output, shape index: {}]
  %s3 = sld [smem:[#allocation0]]
  $region18: #{tpu_custom_call.1} parent=0
    _
  %s5 = ssub.s32 1, %s3
  %s6 = scalar_select 0, %s5, %s3
  $region1: #{tpu_custom_call.1} parent=0
    #allocation2 [shape = 'u8[4096]{0}', space=vmem, size = 0x1000, scoped, tag = 'output window, operand 0, single buffered']
    #allocation3 [shape = 's32[1]{0}', space=sflag, size = 0x4, scoped, tag = 'scoped memory for tpu_custom_call.1']
    %7 = vsyncpa [#allocation3], 0
    // Predicated region
    $region2: #{tpu_custom_call.1} parent=1 // pred_check
      _
    $region3: #{tpu_custom_call.1} parent=1 // pred_check_branch
      %9 = sbr.rel (0) target = $region5
    $region4: #{tpu_custom_call.1} parent=1 // pred_region
      _
    $region5: #{tpu_custom_call.1} parent=1 // pred_fallthru
      _
    // Predicated region
    $region6: #{tpu_custom_call.1} parent=1 // pred_check
      _
    $region7: #{tpu_custom_call.1} parent=1 // pred_check_branch
      %11 = sbr.rel (0) target = $region9
    $region8: #{tpu_custom_call.1} parent=1 // pred_region
      _
    $region9: #{tpu_custom_call.1} parent=1 // pred_fallthru
      _
    %v12 = vld [vmem:[%s0] sm:$0xff]
    %v13 = vld [vmem:[%s1] sm:$0xff]
    %v14 = vlog2.pop %v12
    %v15 = vmul.f32 %v14, 0.6931472
    %v16 = vlaneseq
    %v17 = vand.u32 %v16, 127
    %18 = vset.pattern.permute.xlu0 0
    %19 = vperm.xlu0 %18, %v13
    %v20 = vpop.permute.xlu0 %19
    %vm21 = vcmp.eq.s32.totalorder %v17, %v20
    %v22 = vsel %vm21, 0.903125, 0.003125
    %v23 = vmul.f32 %v15, %v22
    %vm24 = vcmask 261120
    %v25 = vsel %vm24, %v23, 0.0
    %26 = vadd.xlane.f32.xlu0 %v25
    %v27 = vpop.xlane.xlu0 %26
    %v28 = vsub.f32 0.0, %v27
    %s29 = smul.u32 0, 8
    %v30 = vlaneseq
    %v31 = vshrl.u32 %v30, 7
    %v32 = vstv %s29
    %v33 = vadd.s32 %v32, %v31
    %vm34 = vcmp.lt.s32.totalorder %v33, 8
    %v35 = vsel %vm34, %v28, 0.0
    %vm36 = vcmask 7168
    %v37 = vsel %vm36, %v35, 0.0
    %38 = vadd.xlane.f32.xlu0 %v37
    %v39 = vpop.xlane.xlu0 %38
    %v40 = vrot.slane %v39, 4
    %v41 = vadd.f32 %v39, %v40
    %v42 = vrot.slane %v41, 2
    %v43 = vadd.f32 %v41, %v42
    %v44 = vrot.slane %v43, 1
    %v45 = vadd.f32 %v43, %v44
    %s46 = vtos %v45
    %vm47 = vcmp.eq.s32.totalorder %v31, 0
    %vm48 = vcmp.eq.s32.totalorder %v17, 0
    %vm49 = vmand %vm47, %vm48
    %v50 = vstv %s46
    %v51 = vsel %vm49, %v50, 0.0
    %52 = vst [vmem:[#allocation2] sm:$0xff] %v51
    // Predicated region
    $region10: #{tpu_custom_call.1} parent=1 // pred_check
      _
    $region11: #{tpu_custom_call.1} parent=1 // pred_check_branch
      %54 = sbr.rel (0) target = $region13
    $region12: #{tpu_custom_call.1} parent=1 // pred_region
      %s56 = ssub.s32 128, 128
      %57 = vsyncadd [#allocation3], %s56
      %s59 = sshll.u32 [#allocation2], 4
      %s60 = int_to_ptr.vmem [resolvable:$true] %s59
      %62 = dma.vmem_to_hbm [thread:$0]  %s60, 128, %s2, [#allocation3]
    $region13: #{tpu_custom_call.1} parent=1 // pred_fallthru
      _
    // Predicated region
    $region14: #{tpu_custom_call.1} parent=1 // pred_check
      _
    $region15: #{tpu_custom_call.1} parent=1 // pred_check_branch
      %64 = sbr.rel (0) target = $region17
    $region16: #{tpu_custom_call.1} parent=1 // pred_region
      %65 = dma.done [#allocation3], 128
    $region17: #{tpu_custom_call.1} parent=1 // pred_fallthru
      _
    %66 = vsyncpa [#allocation3], 1

</llo_original>
